<compile_context>
chip_gen: v5e
topology: v5e:2x2
jax: 0.10.0
libtpu: 0.0.40
codegen_flags: <defaults>
</compile_context>

<pallas_src>
import jax
import jax.numpy as jnp
import numpy as np
from jax.experimental import pallas as pl
from jax.experimental.pallas import tpu as pltpu


_B_TILE = 128  # samples (lanes) per grid step; raise to 1024+ for very large B.


def _actor_batch_kernel(in_ref, out_ref):
    # in_ref : VMEM (8, _B_TILE) f32
    #   row0=obs0  row1=obs1  row2=thresh(=logit(u), 0.0 in deterministic mode)
    #   row3=a1    row4=a2    row5=a3    row6=micro   row7=pad
    # out_ref: VMEM (8, _B_TILE) f32
    #   row0=action(0/1)  row1=logp  row2=entropy  rows 3..7 = 0
    o0 = in_ref[0:1, :]
    o1 = in_ref[1:2, :]
    thr = in_ref[2:3, :]
    a1 = in_ref[3:4, :]
    a2 = in_ref[4:5, :]
    a3 = in_ref[5:6, :]
    mic = in_ref[6:7, :]

    d = mic * a1 * o1 + a2 * o0 + a3

    # Stable softplus pieces; shared log(1 + exp(-|d|)) term.
    # (jnp.log(1+x) instead of log1p: known-good Mosaic lowering; the accuracy
    #  delta is negligible here because the term is only lost when it is
    #  already < 1e-7 relative to the softplus it feeds.)
    t = jnp.log(1.0 + jnp.exp(-jnp.abs(d)))
    sp_neg = jnp.maximum(-d, 0.0) + t     # -log(p)     = softplus(-d)
    sp_pos = jnp.maximum(d, 0.0) + t      # -log(1 - p) = softplus(d)
    p = jnp.exp(-sp_neg)                  # sigmoid(d), never overflows

    # approach <=> u < p <=> logit(u) < d ; deterministic: thr = 0 <=> p > 0.5
    approach = d > thr

    act = jnp.where(approach, 1.0, 0.0).astype(jnp.float32)
    logp = jnp.where(approach, -sp_neg, -sp_pos)
    entropy = p * sp_neg + (1.0 - p) * sp_pos

    out_ref[...] = jnp.zeros_like(out_ref)
    out_ref[0:1, :] = act
    out_ref[1:2, :] = logp
    out_ref[2:3, :] = entropy


@jax.jit
def _actor_batch_jit(obs, u, a1, a2, a3, micro):
    b = obs.shape[0]
    num_blocks = pl.cdiv(b, _B_TILE)
    b_pad = num_blocks * _B_TILE

    # logit(u): u == 0.5 gives exactly 0.0 (deterministic fold); u == 0 gives
    # -inf, so `d > -inf` is always True, matching `0 < p`.
    thr = jnp.log(u) - jnp.log1p(-u)

    packed = jnp.zeros((8, b_pad), jnp.float32)
    packed = packed.at[0, :b].set(obs[:, 0])
    packed = packed.at[1, :b].set(obs[:, 1])
    packed = packed.at[2, :b].set(thr)
    packed = packed.at[3, :].set(a1)
    packed = packed.at[4, :].set(a2)
    packed = packed.at[5, :].set(a3)
    packed = packed.at[6, :].set(micro)

    out = pl.pallas_call(
        _actor_batch_kernel,
        out_shape=jax.ShapeDtypeStruct((8, b_pad), jnp.float32),
        grid=(num_blocks,),
        in_specs=[pl.BlockSpec((8, _B_TILE), lambda i: (0, i))],
        out_specs=pl.BlockSpec((8, _B_TILE), lambda i: (0, i)),
        compiler_params=pltpu.CompilerParams(
            dimension_semantics=("parallel",)),   # shards over v7x's 2 TCs
    )(packed)

    # Single packed result buffer: row0=action, row1=logp, row2=entropy.
    return out[:3, :b]


def actor_variation_naim_forward_batch(obs, a1, a2, a3,
                                       microstimulation=None,
                                       deterministic=True,
                                       uniform_draws=None,
                                       rng_key=None):
    """Batched ActorVariationNaim forward. obs: (B, 2) float.
    Returns a single (3, B) float32 array: [action(0/1); logp; entropy]."""
    obs = jnp.asarray(obs, jnp.float32)
    if obs.ndim == 1:
        obs = obs[None, :]
    b = obs.shape[0]
    micro = jnp.float32(1.0 if microstimulation is None else microstimulation)
    if deterministic:
        u = jnp.full((b,), 0.5, jnp.float32)      # logit(0.5)=0  <=>  p > 0.5
    elif uniform_draws is not None:
        u = jnp.asarray(uniform_draws, jnp.float32).reshape(b)
    elif rng_key is not None:
        u = jax.random.uniform(rng_key, (b,), dtype=jnp.float32)
    else:
        raise ValueError(
            "stochastic mode needs uniform_draws or rng_key (the PyTorch "
            "module draws torch.rand(1) inside forward)")
    return _actor_batch_jit(obs, u, jnp.float32(a1), jnp.float32(a2),
                            jnp.float32(a3), micro)


# ---- single-sample path: identical math, plain jnp (no custom-call boundary)

@jax.jit
def _actor_single_jit(obs, u, a1, a2, a3, micro):
    d = micro * a1 * obs[0, 1] + a2 * obs[0, 0] + a3
    t = jnp.log1p(jnp.exp(-jnp.abs(d)))
    sp_neg = jnp.maximum(-d, 0.0) + t
    sp_pos = jnp.maximum(d, 0.0) + t
    p = jnp.exp(-sp_neg)
    thr = jnp.log(u) - jnp.log1p(-u)
    approach = d > thr
    act = jnp.where(approach, 1.0, 0.0)
    logp = jnp.where(approach, -sp_neg, -sp_pos)
    entropy = p * sp_neg + (1.0 - p) * sp_pos
    return jnp.stack([act, logp, entropy])        # one (3,) output buffer


def actor_variation_naim_forward(obs, a1, a2, a3,
                                 microstimulation=None,
                                 deterministic=True,
                                 uniform_draw=None,
                                 rng_key=None):
    """Module-equivalent single step: obs (1, 2).
    Returns (int action, float logp, float entropy) via one device readback."""
    obs = jnp.asarray(obs, jnp.float32).reshape(1, 2)
    micro = jnp.float32(1.0 if microstimulation is None else microstimulation)
    if deterministic:
        u = jnp.float32(0.5)
    elif uniform_draw is not None:
        u = jnp.asarray(uniform_draw, jnp.float32)
    elif rng_key is not None:
        u = jax.random.uniform(rng_key, (), dtype=jnp.float32)
    else:
        raise ValueError(
            "stochastic mode needs uniform_draw or rng_key (the PyTorch "
            "module draws torch.rand(1) inside forward)")
    packed = jax.device_get(_actor_single_jit(
        obs, u, jnp.float32(a1), jnp.float32(a2), jnp.float32(a3), micro))
    return int(packed[0]), float(packed[1]), float(packed[2])


# ---- pure numpy reference mirroring the PyTorch forward -----------------

def _reference_batch(obs, a1, a2, a3, micro, deterministic, u):
    obs = np.asarray(obs, np.float64)
    d = micro * a1 * obs[:, 1] + a2 * obs[:, 0] + a3
    p = 1.0 / (1.0 + np.exp(-d))
    if deterministic:
        approach = p > 0.5
    else:
        approach = np.asarray(u, np.float64) < p
    logp = np.where(approach, np.log(p), np.log(1.0 - p))
    ent = -p * np.log(p) - (1.0 - p) * np.log(1.0 - p)
    return approach.astype(np.int32), logp, ent


if __name__ == "__main__":
    key = jax.random.PRNGKey(0)
    k_obs, k_a1, k_a2, k_a3, k_u = jax.random.split(key, 5)

    # Parameters ~ np.random.rand() in the PyTorch __init__ (deterministic here).
    a1 = float(jax.random.uniform(k_a1, ()))
    a2 = float(jax.random.uniform(k_a2, ()))
    a3 = float(jax.random.uniform(k_a3, ()))

    # Batched observations (B, 2); B chosen to exercise padding + a >1 grid.
    B = 300
    obs_batch = jax.random.normal(k_obs, (B, 2), dtype=jnp.float32)

    # --- batched deterministic mode (Pallas kernel) ---
    out_det = actor_variation_naim_forward_batch(
        obs_batch, a1, a2, a3, microstimulation=None, deterministic=True)
    out_det = jax.block_until_ready(out_det)
    out_det_np = np.asarray(out_det)                      # single host fetch

    ref_a, ref_lp, ref_en = _reference_batch(obs_batch, a1, a2, a3, 1.0,
                                             True, None)
    assert np.array_equal(out_det_np[0].astype(np.int32), ref_a)
    assert np.allclose(out_det_np[1], ref_lp, atol=1e-5, rtol=1e-5)
    assert np.allclose(out_det_np[2], ref_en, atol=1e-5, rtol=1e-5)

    # --- batched stochastic mode (externally supplied uniform draws) ---
    u = jax.random.uniform(k_u, (B,), dtype=jnp.float32)
    out_sto = actor_variation_naim_forward_batch(
        obs_batch, a1, a2, a3, microstimulation=0.5, deterministic=False,
        uniform_draws=u)
    out_sto = jax.block_until_ready(out_sto)
    out_sto_np = np.asarray(out_sto)

    ref_a_s, ref_lp_s, ref_en_s = _reference_batch(
        obs_batch, a1, a2, a3, 0.5, False, np.asarray(u))
    assert np.array_equal(out_sto_np[0].astype(np.int32), ref_a_s)
    assert np.allclose(out_sto_np[1], ref_lp_s, atol=1e-5, rtol=1e-5)
    assert np.allclose(out_sto_np[2], ref_en_s, atol=1e-5, rtol=1e-5)

    # --- single-sample path (module-equivalent signature, plain-jnp fast path)
    a_one, lp_one, en_one = actor_variation_naim_forward(
        obs_batch[:1], a1, a2, a3, microstimulation=None, deterministic=True)
    assert a_one == int(ref_a[0])
    assert abs(lp_one - float(ref_lp[0])) < 1e-5
    assert abs(en_one - float(ref_en[0])) < 1e-5

    print("KERNEL_OK")
</pallas_src>

<mosaic_0001>
module attributes {stable_mosaic.version = 11 : i64} {
  func.func @_actor_batch_kernel(%arg0: i32, %arg1: memref<8x128xf32, #tpu.memory_space<vmem>>, %arg2: memref<8x128xf32, #tpu.memory_space<vmem>>) attributes {dimension_semantics = [#tpu.dimension_semantics<parallel>], iteration_bounds = array<i64: 3>, scalar_prefetch = 0 : i64, scratch_operands = 0 : i64, tpu.core_type = #tpu.core_type<tc>, window_params = [{transform_indices = @transform_0, window_bounds = array<i64: 8, 128>}, {transform_indices = @transform_1, window_bounds = array<i64: 8, 128>}]} {
    %c0 = arith.constant 0 : index
    %c0_0 = arith.constant 0 : index
    %0 = vector.load %arg1[%c0, %c0_0] : memref<8x128xf32, #tpu.memory_space<vmem>>, vector<1x128xf32>
    %c1 = arith.constant 1 : index
    %c0_1 = arith.constant 0 : index
    %1 = vector.load %arg1[%c1, %c0_1] : memref<8x128xf32, #tpu.memory_space<vmem>>, vector<1x128xf32>
    %c2 = arith.constant 2 : index
    %c0_2 = arith.constant 0 : index
    %2 = vector.load %arg1[%c2, %c0_2] : memref<8x128xf32, #tpu.memory_space<vmem>>, vector<1x128xf32>
    %c3 = arith.constant 3 : index
    %c0_3 = arith.constant 0 : index
    %3 = vector.load %arg1[%c3, %c0_3] : memref<8x128xf32, #tpu.memory_space<vmem>>, vector<1x128xf32>
    %c4 = arith.constant 4 : index
    %c0_4 = arith.constant 0 : index
    %4 = vector.load %arg1[%c4, %c0_4] : memref<8x128xf32, #tpu.memory_space<vmem>>, vector<1x128xf32>
    %c5 = arith.constant 5 : index
    %c0_5 = arith.constant 0 : index
    %5 = vector.load %arg1[%c5, %c0_5] : memref<8x128xf32, #tpu.memory_space<vmem>>, vector<1x128xf32>
    %c6 = arith.constant 6 : index
    %c0_6 = arith.constant 0 : index
    %6 = vector.load %arg1[%c6, %c0_6] : memref<8x128xf32, #tpu.memory_space<vmem>>, vector<1x128xf32>
    %7 = arith.mulf %6, %3 : vector<1x128xf32>
    %8 = arith.mulf %7, %1 : vector<1x128xf32>
    %9 = arith.mulf %4, %0 : vector<1x128xf32>
    %10 = arith.addf %8, %9 : vector<1x128xf32>
    %11 = arith.addf %10, %5 : vector<1x128xf32>
    %12 = math.absf %11 : vector<1x128xf32>
    %cst = arith.constant 0.000000e+00 : f32
    %13 = vector.broadcast %cst : f32 to vector<1x128xf32>
    %14 = arith.subf %13, %12 : vector<1x128xf32>
    %15 = math.exp %14 : vector<1x128xf32>
    %cst_7 = arith.constant 1.000000e+00 : f32
    %16 = vector.broadcast %cst_7 : f32 to vector<1x128xf32>
    %17 = arith.addf %16, %15 : vector<1x128xf32>
    %18 = math.log %17 : vector<1x128xf32>
    %cst_8 = arith.constant 0.000000e+00 : f32
    %19 = vector.broadcast %cst_8 : f32 to vector<1x128xf32>
    %20 = arith.subf %19, %11 : vector<1x128xf32>
    %cst_9 = arith.constant 0.000000e+00 : f32
    %21 = vector.broadcast %cst_9 : f32 to vector<1x128xf32>
    %22 = arith.maximumf %20, %21 : vector<1x128xf32>
    %23 = arith.addf %22, %18 : vector<1x128xf32>
    %cst_10 = arith.constant 0.000000e+00 : f32
    %24 = vector.broadcast %cst_10 : f32 to vector<1x128xf32>
    %25 = arith.maximumf %11, %24 : vector<1x128xf32>
    %26 = arith.addf %25, %18 : vector<1x128xf32>
    %cst_11 = arith.constant 0.000000e+00 : f32
    %27 = vector.broadcast %cst_11 : f32 to vector<1x128xf32>
    %28 = arith.subf %27, %23 : vector<1x128xf32>
    %29 = math.exp %28 : vector<1x128xf32>
    %30 = arith.cmpf ogt, %11, %2 : vector<1x128xf32>
    %cst_12 = arith.constant 1.000000e+00 : f32
    %cst_13 = arith.constant 0.000000e+00 : f32
    %31 = vector.broadcast %cst_12 : f32 to vector<1x128xf32>
    %32 = vector.broadcast %cst_13 : f32 to vector<1x128xf32>
    %33 = arith.select %30, %31, %32 : vector<1x128xi1>, vector<1x128xf32>
    %cst_14 = arith.constant 0.000000e+00 : f32
    %34 = vector.broadcast %cst_14 : f32 to vector<1x128xf32>
    %35 = arith.subf %34, %23 : vector<1x128xf32>
    %cst_15 = arith.constant 0.000000e+00 : f32
    %36 = vector.broadcast %cst_15 : f32 to vector<1x128xf32>
    %37 = arith.subf %36, %26 : vector<1x128xf32>
    %38 = arith.select %30, %35, %37 : vector<1x128xi1>, vector<1x128xf32>
    %39 = arith.mulf %29, %23 : vector<1x128xf32>
    %cst_16 = arith.constant 1.000000e+00 : f32
    %40 = vector.broadcast %cst_16 : f32 to vector<1x128xf32>
    %41 = arith.subf %40, %29 : vector<1x128xf32>
    %42 = arith.mulf %41, %26 : vector<1x128xf32>
    %43 = arith.addf %39, %42 : vector<1x128xf32>
    %cst_17 = arith.constant 0.000000e+00 : f32
    %44 = vector.broadcast %cst_17 : f32 to vector<8x128xf32>
    %c0_18 = arith.constant 0 : index
    %c0_19 = arith.constant 0 : index
    %45 = vector.load %arg2[%c0_18, %c0_19] : memref<8x128xf32, #tpu.memory_space<vmem>>, vector<8x128xf32>
    tpu.vector_store %arg2[%c0_18, %c0_19], %44 {strides = array<i32>} : memref<8x128xf32, #tpu.memory_space<vmem>>, vector<8x128xf32>,
    %c0_20 = arith.constant 0 : index
    %c0_21 = arith.constant 0 : index
    %46 = vector.load %arg2[%c0_20, %c0_21] : memref<8x128xf32, #tpu.memory_space<vmem>>, vector<1x128xf32>
    tpu.vector_store %arg2[%c0_20, %c0_21], %33 {strides = array<i32>} : memref<8x128xf32, #tpu.memory_space<vmem>>, vector<1x128xf32>,
    %c1_22 = arith.constant 1 : index
    %c0_23 = arith.constant 0 : index
    %47 = vector.load %arg2[%c1_22, %c0_23] : memref<8x128xf32, #tpu.memory_space<vmem>>, vector<1x128xf32>
    tpu.vector_store %arg2[%c1_22, %c0_23], %38 {strides = array<i32>} : memref<8x128xf32, #tpu.memory_space<vmem>>, vector<1x128xf32>,
    %c2_24 = arith.constant 2 : index
    %c0_25 = arith.constant 0 : index
    %48 = vector.load %arg2[%c2_24, %c0_25] : memref<8x128xf32, #tpu.memory_space<vmem>>, vector<1x128xf32>
    tpu.vector_store %arg2[%c2_24, %c0_25], %43 {strides = array<i32>} : memref<8x128xf32, #tpu.memory_space<vmem>>, vector<1x128xf32>,
    return
  }
  func.func @transform_0(%arg0: i32) -> (i32, i32) {
    %c0_i32 = arith.constant 0 : i32
    %c0_i32_0 = arith.constant 0 : i32
    return %c0_i32, %arg0 : i32, i32
  }
  func.func @transform_1(%arg0: i32) -> (i32, i32) {
    %c0_i32 = arith.constant 0 : i32
    %c0_i32_0 = arith.constant 0 : i32
    return %c0_i32, %arg0 : i32, i32
  }
}

</mosaic_0001>

<llo_original>
// kernel: _actor_batch_jit.1
$region0: #{_actor_batch_jit.1}
  #allocation0 [shape = 'u32[]', space=smem, size = 0x4, offset = 0x4, fixed_abs, tag = 'smem constant byte address 0x4 - core index']
  #allocation1 [shape = 'u32[72,128]{1,0:T(1,128)}', space=vmem, size = 0x9000, scoped, tag = 'internal scratch']
  %s0 = inlined_call_operand.vmem [shape: f32[8,384], index: 0, kind: input, shape index: {}]
  %s1 = inlined_call_operand.vmem [shape: f32[8,384], index: 1, kind: output, shape index: {}]
  %s2 = sld [smem:[#allocation0]]
  $region37: #{_actor_batch_jit.1} parent=0
    _
  %s4 = ssub.s32 1, %s2
  %s5 = scalar_select 0, %s4, %s2
  loop: start=0, step=1, limit=5
  $region2: #{_actor_batch_jit.1} parent=0 // loop_pre_header
    _
  $region3: #{_actor_batch_jit.1} parent=0 // loop_header
    %s7 = sphi 0, %s11
    %p8 = scmp.ge.s32.totalorder %s7, 5
    %s17 = sphi 0, %s19
    %s20 = sphi 0, %s17
    %s21 = sphi 0, %s20
    %s37 = sphi 0, %s21
    %s43 = sphi 0, %s45
    %s46 = sphi 0, %s43
    %s47 = sphi 0, %s46
    %s63 = sphi 0, %s47
  $region4: #{_actor_batch_jit.1} parent=0 // loop_header_branch
    %10 = sbr.rel (%p8) target = $region8
  $region5: #{_actor_batch_jit.1} parent=0 // loop_body
    %s12 = ssub.s32 %s7, 1
    %s13 = ssub.s32 %s7, 2
    %s14 = sadd.s32 %s7, 1
    %s15 = ssub.s32 %s7, %s14
    %p16 = scmp.eq.s32.totalorder %s15, 0
    %s18 = sadd.s32 %s17, 1
    %s19 = scalar_select %p16, %s17, %s18
    %p22 = pneg %p16
    %p23 = scmp.eq.s32.totalorder %s7, 2
    %p24 = por %p22, %p23
    %p25 = scmp.ne.s32.totalorder %s17, %s20
    %p26 = scmp.eq.s32.totalorder %s7, 0
    %p27 = por %p25, %p26
    %p28 = scmp.ne.s32.totalorder %s17, %s20
    %p29 = scmp.eq.s32.totalorder %s12, 2
    %p30 = por %p28, %p29
    %p31 = scmp.ne.s32.totalorder %s20, %s21
    %p32 = scmp.eq.s32.totalorder %s12, 0
    %p33 = por %p31, %p32
    %p34 = scmp.ne.s32.totalorder %s20, %s21
    %p35 = scmp.eq.s32.totalorder %s13, 2
    %p36 = por %p34, %p35
    %p38 = scmp.ne.s32.totalorder %s21, %s37
    %p39 = scmp.eq.s32.totalorder %s13, 0
    %p40 = por %p38, %p39
    %s41 = ssub.s32 %s7, %s14
    %p42 = scmp.eq.s32.totalorder %s41, 0
    %s44 = sadd.s32 %s43, 1
    %s45 = scalar_select %p42, %s43, %s44
    %p48 = pneg %p42
    %p49 = scmp.eq.s32.totalorder %s7, 2
    %p50 = por %p48, %p49
    %p51 = scmp.ne.s32.totalorder %s43, %s46
    %p52 = scmp.eq.s32.totalorder %s7, 0
    %p53 = por %p51, %p52
    %p54 = scmp.ne.s32.totalorder %s43, %s46
    %p55 = scmp.eq.s32.totalorder %s12, 2
    %p56 = por %p54, %p55
    %p57 = scmp.ne.s32.totalorder %s46, %s47
    %p58 = scmp.eq.s32.totalorder %s12, 0
    %p59 = por %p57, %p58
    %p60 = scmp.ne.s32.totalorder %s46, %s47
    %p61 = scmp.eq.s32.totalorder %s13, 2
    %p62 = por %p60, %p61
    %p64 = scmp.ne.s32.totalorder %s47, %s63
    %p65 = scmp.eq.s32.totalorder %s13, 0
    %p66 = por %p64, %p65
    %p67 = scmp.le.s32.totalorder 1, %s7
    %p68 = scmp.lt.s32.totalorder %s7, 4
    %p69 = pnand %p67, %p68
    %p70 = pneg %p69
    // Predicated region
    $region9: #{_actor_batch_jit.1} parent=5 // pred_check
      _
    $region10: #{_actor_batch_jit.1} parent=5 // pred_check_branch
      %72 = sbr.rel (%p69) target = $region12
    $region11: #{_actor_batch_jit.1} parent=5 // pred_region
      %s73 = ssub.s32 %s7, 1
    $region12: #{_actor_batch_jit.1} parent=5 // pred_fallthru
      _
    %p74 = scmp.lt.s32.totalorder %s7, 3
    // Predicated region
    $region13: #{_actor_batch_jit.1} parent=5 // pred_check
      %p75 = pneg %p74
    $region14: #{_actor_batch_jit.1} parent=5 // pred_check_branch
      %77 = sbr.rel (%p75) target = $region16
    $region15: #{_actor_batch_jit.1} parent=5 // pred_region
      // Predicated region
      $region17: #{_actor_batch_jit.1} parent=15 // pred_check
        %p78 = pneg %p27
      $region18: #{_actor_batch_jit.1} parent=15 // pred_check_branch
        %80 = sbr.rel (%p78) target = $region20
      $region19: #{_actor_batch_jit.1} parent=15 // pred_region
        %p81 = scmp.lt.s32.totalorder %s7, 2
        %s82 = scalar_select %p81, %s7, 2
        %s83 = smul.addr %s82, 8
        %s84 = scalar_lea.vmem %s0, %s83
      $region20: #{_actor_batch_jit.1} parent=15 // pred_fallthru
        _
    $region16: #{_actor_batch_jit.1} parent=5 // pred_fallthru
      _
    %p85 = scmp.le.s32.totalorder 1, %s7
    %p86 = scmp.lt.s32.totalorder %s7, 4
    %p87 = pnand %p85, %p86
    %p88 = pneg %p87
    // Predicated region
    $region21: #{_actor_batch_jit.1} parent=5 // pred_check
      _
    $region22: #{_actor_batch_jit.1} parent=5 // pred_check_branch
      %90 = sbr.rel (%p87) target = $region24
    $region23: #{_actor_batch_jit.1} parent=5 // pred_region
      %s91 = ssub.s32 %s7, 1
      %p92 = scmp.lt.s32.totalorder %s12, 2
      %s93 = scalar_select %p92, %s12, 2
      %s94 = smul.addr %s93, 8
      %s95 = scalar_lea.vmem %s0, %s94
      %p96 = pneg %p33
      %p97 = pneg %p30
      %p98 = pneg %p59
      %p99 = pneg %p56
      %p100 = scmp.lt.s32.totalorder %s12, 2
      %s101 = scalar_select %p100, %s12, 2
      %s102 = smul.addr %s101, 8
      %s103 = scalar_lea.vmem %s1, %s102
      %p104 = scmp.lt.s32.totalorder %s12, 2
      %s105 = scalar_select %p104, %s12, 2
      %s106 = smul.addr %s105, 8
      %s107 = scalar_lea.vmem %s0, %s106
      %p108 = scmp.lt.s32.totalorder %s12, 2
      %s109 = scalar_select %p108, %s12, 2
      %s110 = smul.addr %s109, 8
      %s111 = scalar_lea.vmem %s1, %s110
      %v112 = vld [vmem:[%s107] sm:$0x1]
      %v113 = vld [vmem:[%s107 + $0x1] sm:$0x1]
      %v114 = vld [vmem:[%s107 + $0x2] sm:$0x1]
      %v115 = vld [vmem:[%s107 + $0x3] sm:$0x1]
      %v116 = vld [vmem:[%s107 + $0x4] sm:$0x1]
      %v117 = vld [vmem:[%s107 + $0x5] sm:$0x1]
      %v118 = vld [vmem:[%s107 + $0x6] sm:$0x1]
      %v119 = vmul.f32 %v118, %v115
      %v120 = vmul.f32 %v119, %v113
      %v121 = vmul.f32 %v116, %v112
      %v122 = vadd.f32 %v120, %v121
      %v123 = vadd.f32 %v122, %v117
      %v124 = vand.u32 2147483647, %v123
      %v125 = vsub.f32 0.0, %v124
      %v126 = vmul.f32 %v125, 1.442695
      %v127 = vpow.pop %v126
      %v128 = vadd.f32 %v127, 1.0
      %v129 = vlog2.pop %v128
      %v130 = vmul.f32 %v129, 0.6931472
      %v131 = vsub.f32 0.0, %v123
      %v132 = vmax.f32 %v131, 0.0
      %v133 = vadd.f32 %v132, %v130
      %v134 = vmax.f32 %v123, 0.0
      %v135 = vadd.f32 %v134, %v130
      %v136 = vsub.f32 0.0, %v133
      %v137 = vmul.f32 %v136, 1.442695
      %v138 = vpow.pop %v137
      %vm139 = vcmp.gt.f32.partialorder %v123, %v114
      %v140 = vsel %vm139, 1.0, 0.0
      %v141 = vsub.f32 0.0, %v135
      %v142 = vsel %vm139, %v136, %v141
      %v143 = vmul.f32 %v138, %v133
      %v144 = vsub.f32 1.0, %v138
      %v145 = vmul.f32 %v144, %v135
      %v146 = vadd.f32 %v143, %v145
      %147 = vst [vmem:[%s111] sm:$0xff] 0.0
      %148 = vst [vmem:[%s111] sm:$0x1] %v140
      %149 = vst [vmem:[%s111 + $0x1] sm:$0x1] %v142
      %150 = vst [vmem:[%s111 + $0x2] sm:$0x1] %v146
      %p151 = scmp.lt.s32.totalorder %s12, 2
      %s152 = scalar_select %p151, %s12, 2
      %s153 = smul.addr %s152, 8
      %s154 = scalar_lea.vmem %s1, %s153
      // Predicated region
      $region25: #{_actor_batch_jit.1} parent=23 // pred_check
        %p155 = pneg %p56
      $region26: #{_actor_batch_jit.1} parent=23 // pred_check_branch
        %157 = sbr.rel (%p155) target = $region28
      $region27: #{_actor_batch_jit.1} parent=23 // pred_region
        _
      $region28: #{_actor_batch_jit.1} parent=23 // pred_fallthru
        _
    $region24: #{_actor_batch_jit.1} parent=5 // pred_fallthru
      _
    %p158 = scmp.le.s32.totalorder 2, %s7
    // Predicated region
    $region29: #{_actor_batch_jit.1} parent=5 // pred_check
      %p159 = pneg %p158
    $region30: #{_actor_batch_jit.1} parent=5 // pred_check_branch
      %161 = sbr.rel (%p159) target = $region32
    $region31: #{_actor_batch_jit.1} parent=5 // pred_region
      %s162 = ssub.s32 %s7, 2
      // Predicated region
      $region33: #{_actor_batch_jit.1} parent=31 // pred_check
        %p163 = pneg %p62
      $region34: #{_actor_batch_jit.1} parent=31 // pred_check_branch
        %165 = sbr.rel (%p163) target = $region36
      $region35: #{_actor_batch_jit.1} parent=31 // pred_region
        %p166 = scmp.lt.s32.totalorder %s13, 2
        %s167 = scalar_select %p166, %s13, 2
        %s168 = smul.addr %s167, 8
        %s169 = scalar_lea.vmem %s1, %s168
      $region36: #{_actor_batch_jit.1} parent=31 // pred_fallthru
        _
    $region32: #{_actor_batch_jit.1} parent=5 // pred_fallthru
      _
  $region6: #{_actor_batch_jit.1} parent=0 // loop_footer
    %s11 = sadd.s32 1, %s7
  $region7: #{_actor_batch_jit.1} parent=0 // loop_footer_branch
    %6 = sbr.rel target = $region3
  $region8: #{_actor_batch_jit.1} parent=0 // loop_exit
    _

</llo_original>
